<compile_context>
chip_gen: v6e
topology: v6e:2x2x1
jax: 0.10.0
libtpu: 0.0.40
codegen_flags: <defaults>
</compile_context>

<pallas_src>
import functools
import math

import jax
import jax.numpy as jnp
from jax.experimental import pallas as pl
from jax.experimental.pallas import tpu as pltpu


def _vanilla_cgn_kernel(mask_ref, invdeg_ref, x_ref, u0_ref, b0_ref,
                        u_stack_t_ref, q_ref, p_ref, out_ref, *, n_layers):
    gb, n_nodes, input_dim = x_ref.shape
    node_dim = u0_ref.shape[1]

    # ---- input projection: shared weights, graphs flattened into rows ------
    x_flat = x_ref[...].reshape(gb * n_nodes, input_dim)            # (Gb*N, in)
    h = jnp.dot(x_flat, u0_ref[...],
                preferred_element_type=jnp.float32) + b0_ref[...]   # (Gb*N, D)

    # int8 {0,1} mask -> bf16 once per group (values exact).  Two-step cast
    # keeps lowering on well-trodden paths (i8 -> f32 -> bf16).
    mask = mask_ref[...].astype(jnp.float32).astype(jnp.bfloat16)   # (Gb, N, N)
    inv_deg = invdeg_ref[...]                                       # (Gb, N, 1)

    def conv_layer(l, h_in):
        h3 = h_in.reshape(gb, n_nodes, node_dim).astype(jnp.bfloat16)
        # neighbor sum: bf16 x bf16 operands, f32 MXU accumulation
        s = jnp.einsum('gij,gjd->gid', mask, h3,
                       preferred_element_type=jnp.float32)          # (Gb, N, D)
        s = (s * inv_deg).reshape(gb * n_nodes, node_dim).astype(jnp.bfloat16)
        return jnp.maximum(
            jnp.dot(s, u_stack_t_ref[l],                            # bf16 U_l^T
                    preferred_element_type=jnp.float32), 0.0)

    if n_layers <= 4:
        for l in range(n_layers):                # static unroll, short stacks
            h = conv_layer(l, h)
    else:
        # bounds vreg live ranges for deep stacks (dynamic l index is fine)
        h = jax.lax.fori_loop(0, n_layers, conv_layer, h)

    # ---- readout: per-graph mean over nodes, P @ relu(Q @ pooled) ----------
    pooled = jnp.sum(h.reshape(gb, n_nodes, node_dim), axis=1) * (1.0 / n_nodes)
    pooled_t = jnp.transpose(pooled)                                # (D, Gb)
    qp = jnp.maximum(jnp.dot(q_ref[...], pooled_t,
                             preferred_element_type=jnp.float32), 0.0)
    # lane-dense store: the Gb graph scalars sit on the lane axis
    out_ref[0] = jnp.dot(p_ref[...], qp,
                         preferred_element_type=jnp.float32)        # (1, Gb)


def _pick_group_size(batch, n_nodes):
    """Largest divisor Gb of batch that still leaves >= 2 grid steps (feeds
    both v7x TensorCores) and keeps the double-buffered int8 mask block under
    a conservative VMEM budget."""
    budget = 8 << 20                      # bytes for the mask double buffer
    best = 1
    for g in range(1, batch + 1):
        if batch % g != 0:
            continue
        if batch > 1 and batch // g < 2:
            continue
        if 2 * g * n_nodes * n_nodes > budget:
            continue
        best = g
    return best


def vanilla_cgn_forward(x, adj, params, n_layers, group_size=None):
    """x: (B, N, input_dim) f32, adj: (B, N, N) f32.  Returns (B,) f32."""
    u0, b0, u_stack, q, p = (params["U0"], params["b0"], params["U"],
                             params["Q"], params["P"])
    B, N, input_dim = x.shape
    node_dim = u0.shape[1]

    gb = group_size if group_size is not None else _pick_group_size(B, N)
    assert B % gb == 0, "batch must be divisible by the per-step group size"
    n_groups = B // gb

    # Wrapper glue (fused by XLA into one pass over adj):
    #   * int8 0/1 neighbor mask, transposed so row i of mask_t[g] holds the
    #     incoming-edge indicators of node i (1/4 of the f32 HBM bytes).
    #   * 1/deg hoisted out of the layer loop.  Like the PyTorch module, an
    #     isolated node (deg == 0) yields inf/NaN; the demo guarantees deg > 0
    #     via self-loops.
    mask_t = jnp.transpose((adj > 0).astype(jnp.int8), (0, 2, 1))   # (B, N, N)
    deg = jnp.sum(adj, axis=1)                                      # (B, N)
    inv_deg = (1.0 / deg)[..., None].astype(jnp.float32)            # (B, N, 1)

    u_stack_t = jnp.transpose(u_stack, (0, 2, 1)).astype(jnp.bfloat16)
    b0_2d = b0.reshape(1, -1).astype(jnp.float32)

    kernel = functools.partial(_vanilla_cgn_kernel, n_layers=n_layers)
    out = pl.pallas_call(
        kernel,
        out_shape=jax.ShapeDtypeStruct((n_groups, 1, gb), jnp.float32),
        grid=(n_groups,),
        in_specs=[
            pl.BlockSpec((gb, N, N), lambda g: (g, 0, 0)),           # mask int8
            pl.BlockSpec((gb, N, 1), lambda g: (g, 0, 0)),           # 1/deg
            pl.BlockSpec((gb, N, input_dim), lambda g: (g, 0, 0)),   # x
            pl.BlockSpec((input_dim, node_dim), lambda g: (0, 0)),   # U0
            pl.BlockSpec((1, node_dim), lambda g: (0, 0)),           # b0
            pl.BlockSpec((n_layers, node_dim, node_dim),
                         lambda g: (0, 0, 0)),                       # U^T bf16
            pl.BlockSpec((node_dim, node_dim), lambda g: (0, 0)),    # Q
            pl.BlockSpec((1, node_dim), lambda g: (0, 0)),           # P
        ],
        out_specs=pl.BlockSpec((1, 1, gb), lambda g: (g, 0, 0)),
        compiler_params=pltpu.CompilerParams(
            dimension_semantics=("parallel",)),                      # 2 TCs on v7x
    )(mask_t, inv_deg, x, u0, b0_2d, u_stack_t, q, p)
    return out.reshape(B)


# ---------------- deterministic parameter init (matches __init__ shapes) -----
def _xavier_uniform(key, shape):
    fan_in, fan_out = shape[-1], shape[-2]
    bound = math.sqrt(6.0 / (fan_in + fan_out))
    return jax.random.uniform(key, shape, jnp.float32, minval=-bound, maxval=bound)


def _xavier_normal(key, shape):
    fan_in, fan_out = shape[-1], shape[-2]
    std = math.sqrt(2.0 / (fan_in + fan_out))
    return std * jax.random.normal(key, shape, jnp.float32)


def init_params(key, input_dim, node_dim, n_layers):
    keys = jax.random.split(key, 4 + n_layers)
    return {
        "U0": _xavier_uniform(keys[0], (input_dim, node_dim)),
        "b0": jax.random.normal(keys[1], (node_dim,), jnp.float32) / 1000.0,
        "U": jnp.stack([_xavier_uniform(keys[4 + l], (node_dim, node_dim))
                        for l in range(n_layers)]),
        "Q": _xavier_normal(keys[2], (node_dim, node_dim)),
        "P": _xavier_normal(keys[3], (1, node_dim)),
    }


# ---------------- plain-JAX reference (pure f32, for correctness check) ------
def reference_forward(x, adj, params, n_layers):
    h = x @ params["U0"] + params["b0"]
    mask = (adj > 0).astype(jnp.float32)
    deg = jnp.sum(adj, axis=0)                         # deg_i = adj[:, i].sum()
    for l in range(n_layers):
        s = mask.T @ h
        h = jax.nn.relu((s @ params["U"][l].T) / deg[:, None])
    pooled = jnp.sum(h, axis=0) / h.shape[0]
    return (params["P"] @ jax.nn.relu(params["Q"] @ pooled)).squeeze()


if __name__ == "__main__":
    # NOTE: the PyTorch ConvNetLayer only type-checks for a 2-D node-feature
    # input and a single conv layer (a second layer would boolean-index the
    # size-1 batch dim), so the demo uses n_layers=1; the kernel loop is
    # generic in n_layers.
    B, N, input_dim, node_dim, n_layers = 4, 16, 16, 32, 1

    key = jax.random.PRNGKey(0)
    kx, kadj, kparams = jax.random.split(key, 3)

    x = jax.random.normal(kx, (B, N, input_dim), jnp.float32)
    adj = (jax.random.uniform(kadj, (B, N, N)) > 0.5).astype(jnp.float32)
    adj = jnp.clip(adj + jnp.eye(N, dtype=jnp.float32)[None], 0.0, 1.0)  # deg > 0

    params = init_params(kparams, input_dim, node_dim, n_layers)

    out = vanilla_cgn_forward(x, adj, params, n_layers)
    out = jax.block_until_ready(out)

    ref = jnp.stack([reference_forward(x[b], adj[b], params, n_layers)
                     for b in range(B)])
    # Tolerance loosened vs the pure-f32 reference: the mask @ h and h @ U^T
    # contractions use bf16 operands (f32 MXU accumulation).
    assert jnp.allclose(out, ref, atol=2e-2, rtol=2e-2), (out, ref)
    print("KERNEL_OK")
</pallas_src>

<mosaic_0001>
module attributes {stable_mosaic.version = 11 : i64} {
  func.func @_vanilla_cgn_kernel(%arg0: i32, %arg1: memref<2x16x16xi8, #tpu.memory_space<vmem>>, %arg2: memref<2x16x1xf32, #tpu.memory_space<vmem>>, %arg3: memref<2x16x16xf32, #tpu.memory_space<vmem>>, %arg4: memref<16x32xf32, #tpu.memory_space<vmem>>, %arg5: memref<1x32xf32, #tpu.memory_space<vmem>>, %arg6: memref<1x32x32xbf16, #tpu.memory_space<vmem>>, %arg7: memref<32x32xf32, #tpu.memory_space<vmem>>, %arg8: memref<1x32xf32, #tpu.memory_space<vmem>>, %arg9: memref<1x1x2xf32, #tpu.memory_space<vmem>>) attributes {dimension_semantics = [#tpu.dimension_semantics<parallel>], iteration_bounds = array<i64: 2>, scalar_prefetch = 0 : i64, scratch_operands = 0 : i64, tpu.core_type = #tpu.core_type<tc>, window_params = [{transform_indices = @transform_0, window_bounds = array<i64: 2, 16, 16>}, {transform_indices = @transform_1, window_bounds = array<i64: 2, 16, 1>}, {transform_indices = @transform_2, window_bounds = array<i64: 2, 16, 16>}, {pipeline_mode = #tpu.pipeline_mode<synchronous>, transform_indices = @transform_3, window_bounds = array<i64: 16, 32>}, {pipeline_mode = #tpu.pipeline_mode<synchronous>, transform_indices = @transform_4, window_bounds = array<i64: 1, 32>}, {pipeline_mode = #tpu.pipeline_mode<synchronous>, transform_indices = @transform_5, window_bounds = array<i64: 1, 32, 32>}, {pipeline_mode = #tpu.pipeline_mode<synchronous>, transform_indices = @transform_6, window_bounds = array<i64: 32, 32>}, {pipeline_mode = #tpu.pipeline_mode<synchronous>, transform_indices = @transform_7, window_bounds = array<i64: 1, 32>}, {transform_indices = @transform_8, window_bounds = array<i64: 1, 1, 2>}]} {
    %c0 = arith.constant 0 : index
    %c0_0 = arith.constant 0 : index
    %c0_1 = arith.constant 0 : index
    %0 = vector.load %arg3[%c0, %c0_0, %c0_1] : memref<2x16x16xf32, #tpu.memory_space<vmem>>, vector<2x16x16xf32>
    %1 = vector.shape_cast %0 : vector<2x16x16xf32> to vector<32x16xf32>
    %c0_2 = arith.constant 0 : index
    %c0_3 = arith.constant 0 : index
    %2 = vector.load %arg4[%c0_2, %c0_3] : memref<16x32xf32, #tpu.memory_space<vmem>>, vector<16x32xf32>
    %cst = arith.constant dense<0.000000e+00> : vector<32x32xf32>
    %3 = tpu.matmul %1, %2, %cst {dimension_numbers = #tpu.dot_dimension_numbers<[1], [0], [0], [1], [0, 0, 1, 1], [], []>} : vector<32x16xf32>, vector<16x32xf32>, vector<32x32xf32> -> vector<32x32xf32>
    %c0_4 = arith.constant 0 : index
    %c0_5 = arith.constant 0 : index
    %4 = vector.load %arg5[%c0_4, %c0_5] : memref<1x32xf32, #tpu.memory_space<vmem>>, vector<1x32xf32>
    %5 = vector.broadcast %4 : vector<1x32xf32> to vector<32x32xf32>
    %6 = arith.addf %3, %5 : vector<32x32xf32>
    %c0_6 = arith.constant 0 : index
    %c0_7 = arith.constant 0 : index
    %c0_8 = arith.constant 0 : index
    %7 = vector.load %arg1[%c0_6, %c0_7, %c0_8] : memref<2x16x16xi8, #tpu.memory_space<vmem>>, vector<2x16x16xi8>
    %8 = arith.sitofp %7 : vector<2x16x16xi8> to vector<2x16x16xf32>
    %9 = arith.truncf %8 : vector<2x16x16xf32> to vector<2x16x16xbf16>
    %c0_9 = arith.constant 0 : index
    %c0_10 = arith.constant 0 : index
    %c0_11 = arith.constant 0 : index
    %10 = vector.load %arg2[%c0_9, %c0_10, %c0_11] : memref<2x16x1xf32, #tpu.memory_space<vmem>>, vector<2x16x1xf32>
    %11 = vector.shape_cast %6 : vector<32x32xf32> to vector<2x16x32xf32>
    %12 = arith.truncf %11 : vector<2x16x32xf32> to vector<2x16x32xbf16>
    "tpu.trace_start"() <{level = 10 : i32, message = "gij,gjd->gid"}> : () -> ()
    %cst_12 = arith.constant dense<0.000000e+00> : vector<2x16x32xf32>
    %13 = tpu.matmul %9, %12, %cst_12 {dimension_numbers = #tpu.dot_dimension_numbers<[2], [1], [1], [2], [0, 0, 0, 1, 1, 2], [0], [0]>} : vector<2x16x16xbf16>, vector<2x16x32xbf16>, vector<2x16x32xf32> -> vector<2x16x32xf32>
    "tpu.trace_stop"() : () -> ()
    %14 = vector.broadcast %10 : vector<2x16x1xf32> to vector<2x16x32xf32>
    %15 = arith.mulf %13, %14 : vector<2x16x32xf32>
    %16 = vector.shape_cast %15 : vector<2x16x32xf32> to vector<32x32xf32>
    %17 = arith.truncf %16 : vector<32x32xf32> to vector<32x32xbf16>
    %c0_13 = arith.constant 0 : index
    %c0_14 = arith.constant 0 : index
    %c0_15 = arith.constant 0 : index
    %18 = vector.load %arg6[%c0_13, %c0_14, %c0_15] : memref<1x32x32xbf16, #tpu.memory_space<vmem>>, vector<1x32x32xbf16>
    %19 = vector.shape_cast %18 : vector<1x32x32xbf16> to vector<32x32xbf16>
    %cst_16 = arith.constant dense<0.000000e+00> : vector<32x32xf32>
    %20 = tpu.matmul %17, %19, %cst_16 {dimension_numbers = #tpu.dot_dimension_numbers<[1], [0], [0], [1], [0, 0, 1, 1], [], []>} : vector<32x32xbf16>, vector<32x32xbf16>, vector<32x32xf32> -> vector<32x32xf32>
    %cst_17 = arith.constant 0.000000e+00 : f32
    %21 = vector.broadcast %cst_17 : f32 to vector<32x32xf32>
    %22 = arith.maximumf %20, %21 : vector<32x32xf32>
    %23 = vector.shape_cast %22 : vector<32x32xf32> to vector<2x16x32xf32>
    %cst_18 = arith.constant dense<0.000000e+00> : vector<2x32xf32>
    %24 = vector.multi_reduction <add>, %23, %cst_18 [1] : vector<2x16x32xf32> to vector<2x32xf32>
    %cst_19 = arith.constant 6.250000e-02 : f32
    %25 = vector.broadcast %cst_19 : f32 to vector<2x32xf32>
    %26 = arith.mulf %24, %25 : vector<2x32xf32>
    %27 = tpu.transpose %26, [1, 0] : vector<2x32xf32> -> vector<32x2xf32>
    %c0_20 = arith.constant 0 : index
    %c0_21 = arith.constant 0 : index
    %28 = vector.load %arg7[%c0_20, %c0_21] : memref<32x32xf32, #tpu.memory_space<vmem>>, vector<32x32xf32>
    %cst_22 = arith.constant dense<0.000000e+00> : vector<32x2xf32>
    %29 = tpu.matmul %28, %27, %cst_22 {dimension_numbers = #tpu.dot_dimension_numbers<[1], [0], [0], [1], [0, 0, 1, 1], [], []>} : vector<32x32xf32>, vector<32x2xf32>, vector<32x2xf32> -> vector<32x2xf32>
    %cst_23 = arith.constant 0.000000e+00 : f32
    %30 = vector.broadcast %cst_23 : f32 to vector<32x2xf32>
    %31 = arith.maximumf %29, %30 : vector<32x2xf32>
    %c0_24 = arith.constant 0 : index
    %c0_25 = arith.constant 0 : index
    %32 = vector.load %arg8[%c0_24, %c0_25] : memref<1x32xf32, #tpu.memory_space<vmem>>, vector<1x32xf32>
    %cst_26 = arith.constant dense<0.000000e+00> : vector<1x2xf32>
    %33 = tpu.matmul %32, %31, %cst_26 {dimension_numbers = #tpu.dot_dimension_numbers<[1], [0], [0], [1], [0, 0, 1, 1], [], []>} : vector<1x32xf32>, vector<32x2xf32>, vector<1x2xf32> -> vector<1x2xf32>
    %c0_27 = arith.constant 0 : index
    %c0_28 = arith.constant 0 : index
    %c0_29 = arith.constant 0 : index
    %34 = vector.load %arg9[%c0_27, %c0_28, %c0_29] : memref<1x1x2xf32, #tpu.memory_space<vmem>>, vector<1x1x2xf32>
    %35 = vector.shape_cast %34 : vector<1x1x2xf32> to vector<1x2xf32>
    %36 = vector.shape_cast %33 : vector<1x2xf32> to vector<1x1x2xf32>
    tpu.vector_store %arg9[%c0_27, %c0_28, %c0_29], %36 {strides = array<i32>} : memref<1x1x2xf32, #tpu.memory_space<vmem>>, vector<1x1x2xf32>,
    return
  }
  func.func @transform_0(%arg0: i32) -> (i32, i32, i32) {
    %c0_i32 = arith.constant 0 : i32
    %c0_i32_0 = arith.constant 0 : i32
    %c0_i32_1 = arith.constant 0 : i32
    return %arg0, %c0_i32, %c0_i32_0 : i32, i32, i32
  }
  func.func @transform_1(%arg0: i32) -> (i32, i32, i32) {
    %c0_i32 = arith.constant 0 : i32
    %c0_i32_0 = arith.constant 0 : i32
    %c0_i32_1 = arith.constant 0 : i32
    return %arg0, %c0_i32, %c0_i32_0 : i32, i32, i32
  }
  func.func @transform_2(%arg0: i32) -> (i32, i32, i32) {
    %c0_i32 = arith.constant 0 : i32
    %c0_i32_0 = arith.constant 0 : i32
    %c0_i32_1 = arith.constant 0 : i32
    return %arg0, %c0_i32, %c0_i32_0 : i32, i32, i32
  }
  func.func @transform_3(%arg0: i32) -> (i32, i32) {
    %c0_i32 = arith.constant 0 : i32
    %c0_i32_0 = arith.constant 0 : i32
    %c0_i32_1 = arith.constant 0 : i32
    return %c0_i32, %c0_i32_0 : i32, i32
  }
  func.func @transform_4(%arg0: i32) -> (i32, i32) {
    %c0_i32 = arith.constant 0 : i32
    %c0_i32_0 = arith.constant 0 : i32
    %c0_i32_1 = arith.constant 0 : i32
    return %c0_i32, %c0_i32_0 : i32, i32
  }
  func.func @transform_5(%arg0: i32) -> (i32, i32, i32) {
    %c0_i32 = arith.constant 0 : i32
    %c0_i32_0 = arith.constant 0 : i32
    %c0_i32_1 = arith.constant 0 : i32
    %c0_i32_2 = arith.constant 0 : i32
    return %c0_i32, %c0_i32_0, %c0_i32_1 : i32, i32, i32
  }
  func.func @transform_6(%arg0: i32) -> (i32, i32) {
    %c0_i32 = arith.constant 0 : i32
    %c0_i32_0 = arith.constant 0 : i32
    %c0_i32_1 = arith.constant 0 : i32
    return %c0_i32, %c0_i32_0 : i32, i32
  }
  func.func @transform_7(%arg0: i32) -> (i32, i32) {
    %c0_i32 = arith.constant 0 : i32
    %c0_i32_0 = arith.constant 0 : i32
    %c0_i32_1 = arith.constant 0 : i32
    return %c0_i32, %c0_i32_0 : i32, i32
  }
  func.func @transform_8(%arg0: i32) -> (i32, i32, i32) {
    %c0_i32 = arith.constant 0 : i32
    %c0_i32_0 = arith.constant 0 : i32
    %c0_i32_1 = arith.constant 0 : i32
    return %arg0, %c0_i32, %c0_i32_0 : i32, i32, i32
  }
}

</mosaic_0001>

<llo_original>
// kernel: tpu_custom_call.1
$region0: #{tpu_custom_call.1}
  #allocation0 [shape = 'u32[]', space=smem, size = 0x4, offset = 0x4, fixed_abs, tag = 'smem constant byte address 0x4 - core index']
  #allocation1 [shape = 'u32[144,128]{1,0:T(1,128)}', space=vmem, size = 0x12000, scoped, tag = 'internal scratch']
  %s0 = inlined_call_operand.hbm [shape: s8[4,16,16], index: 0, kind: input, shape index: {}]
  %s1 = inlined_call_operand.vmem [shape: f32[4,16,1], index: 1, kind: input, shape index: {}]
  %s2 = inlined_call_operand.vmem [shape: f32[4,16,16], index: 2, kind: input, shape index: {}]
  %s3 = inlined_call_operand.hbm [shape: f32[16,32], index: 3, kind: input, shape index: {}]
  %s4 = inlined_call_operand.vmem [shape: f32[1,32], index: 4, kind: input, shape index: {}]
  %s5 = inlined_call_operand.hbm [shape: bf16[1,32,32], index: 5, kind: input, shape index: {}]
  %s6 = inlined_call_operand.hbm [shape: f32[32,32], index: 6, kind: input, shape index: {}]
  %s7 = inlined_call_operand.vmem [shape: f32[1,32], index: 7, kind: input, shape index: {}]
  %s8 = inlined_call_operand.hbm [shape: f32[2,1,2], index: 8, kind: output, shape index: {}]
  %s9 = sld [smem:[#allocation0]]
  $region81: #{tpu_custom_call.1} parent=0
    _
  %s11 = ssub.s32 1, %s9
  %s12 = scalar_select 0, %s11, %s9
  $region1: #{tpu_custom_call.1} parent=0
    #allocation2 [shape = 'u8[8192]{0}', space=vmem, size = 0x2000, scoped, tag = 'input window, operand 0']
    #allocation3 [shape = 's32[2]{0}', space=sflag, size = 0x8, scoped, tag = 'scoped memory for tpu_custom_call.1']
    #allocation4 [shape = 's32[2]{0}', space=sflag, size = 0x8, scoped, tag = 'scoped memory for tpu_custom_call.1']
    #allocation5 [shape = 'u8[8192]{0}', space=vmem, size = 0x2000, scoped, tag = 'input window, operand 3, single buffered']
    #allocation6 [shape = 's32[1]{0}', space=sflag, size = 0x4, scoped, tag = 'scoped memory for tpu_custom_call.1']
    #allocation7 [shape = 'u8[8192]{0}', space=vmem, size = 0x2000, scoped, tag = 'input window, operand 5, single buffered']
    #allocation8 [shape = 'u8[16384]{0}', space=vmem, size = 0x4000, scoped, tag = 'input window, operand 6, single buffered']
    #allocation9 [shape = 's32[1]{0}', space=sflag, size = 0x4, scoped, tag = 'scoped memory for tpu_custom_call.1']
    #allocation10 [shape = 'u8[1024]{0}', space=vmem, size = 0x400, scoped, tag = 'output window, operand 0']
    %13 = vsyncpa [#allocation3], 0
    %s14 = scalar_lea.sflag [#allocation3], 1
    %15 = vsyncpa %s14, 0
    %16 = vsyncpa [#allocation6], 0
    %17 = vsyncpa [#allocation9], 0
    %18 = vsyncpa [#allocation4], 0
    %s19 = scalar_lea.sflag [#allocation4], 1
    %20 = vsyncpa %s19, 0
    loop: start=0, step=1, limit=4
    $region2: #{tpu_custom_call.1} parent=1 // loop_pre_header
      _
    $region3: #{tpu_custom_call.1} parent=1 // loop_header
      %s22 = sphi 0, %s26
      %p23 = scmp.ge.s32.totalorder %s22, 4
      %s32 = sphi 0, %s34
      %s35 = sphi 0, %s32
      %s36 = sphi 0, %s35
      %s52 = sphi 0, %s36
      %s58 = sphi 0, %s60
      %s61 = sphi 0, %s58
      %s62 = sphi 0, %s61
      %s78 = sphi 0, %s62
      %s84 = sphi 0, %s86
      %s87 = sphi 0, %s84
      %s88 = sphi 0, %s87
      %s104 = sphi 0, %s88
      %s108 = sphi 0, %s108
      %s110 = sphi 0, %s108
      %s111 = sphi 0, %s110
      %s125 = sphi 0, %s111
      %s129 = sphi 0, %s129
      %s131 = sphi 0, %s129
      %s132 = sphi 0, %s131
      %s146 = sphi 0, %s132
      %s150 = sphi 0, %s150
      %s152 = sphi 0, %s150
      %s153 = sphi 0, %s152
      %s167 = sphi 0, %s153
      %s171 = sphi 0, %s171
      %s173 = sphi 0, %s171
      %s174 = sphi 0, %s173
      %s188 = sphi 0, %s174
      %s192 = sphi 0, %s192
      %s194 = sphi 0, %s192
      %s195 = sphi 0, %s194
      %s209 = sphi 0, %s195
      %s215 = sphi 0, %s217
      %s218 = sphi 0, %s215
      %s219 = sphi 0, %s218
      %s235 = sphi 0, %s219
    $region4: #{tpu_custom_call.1} parent=1 // loop_header_branch
      %25 = sbr.rel (%p23) target = $region8
    $region5: #{tpu_custom_call.1} parent=1 // loop_body
      %s27 = ssub.s32 %s22, 1
      %s28 = ssub.s32 %s22, 2
      %s29 = sadd.s32 %s22, 1
      %s30 = ssub.s32 %s22, %s29
      %p31 = scmp.eq.s32.totalorder %s30, 0
      %s33 = sadd.s32 %s32, 1
      %s34 = scalar_select %p31, %s32, %s33
      %p37 = pneg %p31
      %p38 = scmp.eq.s32.totalorder %s22, 1
      %p39 = por %p37, %p38
      %p40 = scmp.ne.s32.totalorder %s32, %s35
      %p41 = scmp.eq.s32.totalorder %s22, 0
      %p42 = por %p40, %p41
      %p43 = scmp.ne.s32.totalorder %s32, %s35
      %p44 = scmp.eq.s32.totalorder %s27, 1
      %p45 = por %p43, %p44
      %p46 = scmp.ne.s32.totalorder %s35, %s36
      %p47 = scmp.eq.s32.totalorder %s27, 0
      %p48 = por %p46, %p47
      %p49 = scmp.ne.s32.totalorder %s35, %s36
      %p50 = scmp.eq.s32.totalorder %s28, 1
      %p51 = por %p49, %p50
      %p53 = scmp.ne.s32.totalorder %s36, %s52
      %p54 = scmp.eq.s32.totalorder %s28, 0
      %p55 = por %p53, %p54
      %s56 = ssub.s32 %s22, %s29
      %p57 = scmp.eq.s32.totalorder %s56, 0
      %s59 = sadd.s32 %s58, 1
      %s60 = scalar_select %p57, %s58, %s59
      %p63 = pneg %p57
      %p64 = scmp.eq.s32.totalorder %s22, 1
      %p65 = por %p63, %p64
      %p66 = scmp.ne.s32.totalorder %s58, %s61
      %p67 = scmp.eq.s32.totalorder %s22, 0
      %p68 = por %p66, %p67
      %p69 = scmp.ne.s32.totalorder %s58, %s61
      %p70 = scmp.eq.s32.totalorder %s27, 1
      %p71 = por %p69, %p70
      %p72 = scmp.ne.s32.totalorder %s61, %s62
      %p73 = scmp.eq.s32.totalorder %s27, 0
      %p74 = por %p72, %p73
      %p75 = scmp.ne.s32.totalorder %s61, %s62
      %p76 = scmp.eq.s32.totalorder %s28, 1
      %p77 = por %p75, %p76
      %p79 = scmp.ne.s32.totalorder %s62, %s78
      %p80 = scmp.eq.s32.totalorder %s28, 0
      %p81 = por %p79, %p80
      %s82 = ssub.s32 %s22, %s29
      %p83 = scmp.eq.s32.totalorder %s82, 0
      %s85 = sadd.s32 %s84, 1
      %s86 = scalar_select %p83, %s84, %s85
      %p89 = pneg %p83
      %p90 = scmp.eq.s32.totalorder %s22, 1
      %p91 = por %p89, %p90
      %p92 = scmp.ne.s32.totalorder %s84, %s87
      %p93 = scmp.eq.s32.totalorder %s22, 0
      %p94 = por %p92, %p93
      %p95 = scmp.ne.s32.totalorder %s84, %s87
      %p96 = scmp.eq.s32.totalorder %s27, 1
      %p97 = por %p95, %p96
      %p98 = scmp.ne.s32.totalorder %s87, %s88
      %p99 = scmp.eq.s32.totalorder %s27, 0
      %p100 = por %p98, %p99
      %p101 = scmp.ne.s32.totalorder %s87, %s88
      %p102 = scmp.eq.s32.totalorder %s28, 1
      %p103 = por %p101, %p102
      %p105 = scmp.ne.s32.totalorder %s88, %s104
      %p106 = scmp.eq.s32.totalorder %s28, 0
      %p107 = por %p105, %p106
      %s109 = sadd.s32 %s108, 1
      %p112 = scmp.eq.s32.totalorder %s22, 1
      %p113 = scmp.ne.s32.totalorder %s108, %s110
      %p114 = scmp.eq.s32.totalorder %s22, 0
      %p115 = por %p113, %p114
      %p116 = scmp.ne.s32.totalorder %s108, %s110
      %p117 = scmp.eq.s32.totalorder %s27, 1
      %p118 = por %p116, %p117
      %p119 = scmp.ne.s32.totalorder %s110, %s111
      %p120 = scmp.eq.s32.totalorder %s27, 0
      %p121 = por %p119, %p120
      %p122 = scmp.ne.s32.totalorder %s110, %s111
      %p123 = scmp.eq.s32.totalorder %s28, 1
      %p124 = por %p122, %p123
      %p126 = scmp.ne.s32.totalorder %s111, %s125
      %p127 = scmp.eq.s32.totalorder %s28, 0
      %p128 = por %p126, %p127
      %s130 = sadd.s32 %s129, 1
      %p133 = scmp.eq.s32.totalorder %s22, 1
      %p134 = scmp.ne.s32.totalorder %s129, %s131
      %p135 = scmp.eq.s32.totalorder %s22, 0
      %p136 = por %p134, %p135
      %p137 = scmp.ne.s32.totalorder %s129, %s131
      %p138 = scmp.eq.s32.totalorder %s27, 1
      %p139 = por %p137, %p138
      %p140 = scmp.ne.s32.totalorder %s131, %s132
      %p141 = scmp.eq.s32.totalorder %s27, 0
      %p142 = por %p140, %p141
      %p143 = scmp.ne.s32.totalorder %s131, %s132
      %p144 = scmp.eq.s32.totalorder %s28, 1
      %p145 = por %p143, %p144
      %p147 = scmp.ne.s32.totalorder %s132, %s146
      %p148 = scmp.eq.s32.totalorder %s28, 0
      %p149 = por %p147, %p148
      %s151 = sadd.s32 %s150, 1
      %p154 = scmp.eq.s32.totalorder %s22, 1
      %p155 = scmp.ne.s32.totalorder %s150, %s152
      %p156 = scmp.eq.s32.totalorder %s22, 0
      %p157 = por %p155, %p156
      %p158 = scmp.ne.s32.totalorder %s150, %s152
      %p159 = scmp.eq.s32.totalorder %s27, 1
      %p160 = por %p158, %p159
      %p161 = scmp.ne.s32.totalorder %s152, %s153
      %p162 = scmp.eq.s32.totalorder %s27, 0
      %p163 = por %p161, %p162
      %p164 = scmp.ne.s32.totalorder %s152, %s153
      %p165 = scmp.eq.s32.totalorder %s28, 1
      %p166 = por %p164, %p165
      %p168 = scmp.ne.s32.totalorder %s153, %s167
      %p169 = scmp.eq.s32.totalorder %s28, 0
      %p170 = por %p168, %p169
      %s172 = sadd.s32 %s171, 1
      %p175 = scmp.eq.s32.totalorder %s22, 1
      %p176 = scmp.ne.s32.totalorder %s171, %s173
      %p177 = scmp.eq.s32.totalorder %s22, 0
      %p178 = por %p176, %p177
      %p179 = scmp.ne.s32.totalorder %s171, %s173
      %p180 = scmp.eq.s32.totalorder %s27, 1
      %p181 = por %p179, %p180
      %p182 = scmp.ne.s32.totalorder %s173, %s174
      %p183 = scmp.eq.s32.totalorder %s27, 0
      %p184 = por %p182, %p183
      %p185 = scmp.ne.s32.totalorder %s173, %s174
      %p186 = scmp.eq.s32.totalorder %s28, 1
      %p187 = por %p185, %p186
      %p189 = scmp.ne.s32.totalorder %s174, %s188
      %p190 = scmp.eq.s32.totalorder %s28, 0
      %p191 = por %p189, %p190
      %s193 = sadd.s32 %s192, 1
      %p196 = scmp.eq.s32.totalorder %s22, 1
      %p197 = scmp.ne.s32.totalorder %s192, %s194
      %p198 = scmp.eq.s32.totalorder %s22, 0
      %p199 = por %p197, %p198
      %p200 = scmp.ne.s32.totalorder %s192, %s194
      %p201 = scmp.eq.s32.totalorder %s27, 1
      %p202 = por %p200, %p201
      %p203 = scmp.ne.s32.totalorder %s194, %s195
      %p204 = scmp.eq.s32.totalorder %s27, 0
      %p205 = por %p203, %p204
      %p206 = scmp.ne.s32.totalorder %s194, %s195
      %p207 = scmp.eq.s32.totalorder %s28, 1
      %p208 = por %p206, %p207
      %p210 = scmp.ne.s32.totalorder %s195, %s209
      %p211 = scmp.eq.s32.totalorder %s28, 0
      %p212 = por %p210, %p211
      %s213 = ssub.s32 %s22, %s29
      %p214 = scmp.eq.s32.totalorder %s213, 0
      %s216 = sadd.s32 %s215, 1
      %s217 = scalar_select %p214, %s215, %s216
      %p220 = pneg %p214
      %p221 = scmp.eq.s32.totalorder %s22, 1
      %p222 = por %p220, %p221
      %p223 = scmp.ne.s32.totalorder %s215, %s218
      %p224 = scmp.eq.s32.totalorder %s22, 0
      %p225 = por %p223, %p224
      %p226 = scmp.ne.s32.totalorder %s215, %s218
      %p227 = scmp.eq.s32.totalorder %s27, 1
      %p228 = por %p226, %p227
      %p229 = scmp.ne.s32.totalorder %s218, %s219
      %p230 = scmp.eq.s32.totalorder %s27, 0
      %p231 = por %p229, %p230
      %p232 = scmp.ne.s32.totalorder %s218, %s219
      %p233 = scmp.eq.s32.totalorder %s28, 1
      %p234 = por %p232, %p233
      %p236 = scmp.ne.s32.totalorder %s219, %s235
      %p237 = scmp.eq.s32.totalorder %s28, 0
      %p238 = por %p236, %p237
      %p239 = scmp.le.s32.totalorder 1, %s22
      %p240 = scmp.lt.s32.totalorder %s22, 3
      %p241 = pnand %p239, %p240
      %p242 = pneg %p241
      // Predicated region
      $region9: #{tpu_custom_call.1} parent=5 // pred_check
        _
      $region10: #{tpu_custom_call.1} parent=5 // pred_check_branch
        %244 = sbr.rel (%p241) target = $region12
      $region11: #{tpu_custom_call.1} parent=5 // pred_region
        %s245 = ssub.s32 %s22, 1
        // Predicated region
        $region13: #{tpu_custom_call.1} parent=11 // pred_check
          %p246 = pneg %p121
        $region14: #{tpu_custom_call.1} parent=11 // pred_check_branch
          %248 = sbr.rel (%p246) target = $region16
        $region15: #{tpu_custom_call.1} parent=11 // pred_region
          %s250 = ssub.s32 256, 256
          %251 = vsyncadd [#allocation6], %s250
          %s252 = sshll.u32 [#allocation5], 4
          %s253 = int_to_ptr.vmem [resolvable:$true] %s252
          %258 = dma.hbm_to_vmem [thread:$0]  %s3, 256, %s253, [#allocation6], 128, 128, 8
        $region16: #{tpu_custom_call.1} parent=11 // pred_fallthru
          _
        // Predicated region
        $region17: #{tpu_custom_call.1} parent=11 // pred_check
          %p259 = pneg %p142
        $region18: #{tpu_custom_call.1} parent=11 // pred_check_branch
          %261 = sbr.rel (%p259) target = $region20
        $region19: #{tpu_custom_call.1} parent=11 // pred_region
          _
        $region20: #{tpu_custom_call.1} parent=11 // pred_fallthru
          _
        // Predicated region
        $region21: #{tpu_custom_call.1} parent=11 // pred_check
          %p262 = pneg %p163
        $region22: #{tpu_custom_call.1} parent=11 // pred_check_branch
          %264 = sbr.rel (%p262) target = $region24
        $region23: #{tpu_custom_call.1} parent=11 // pred_region
          %s266 = ssub.s32 256, 256
          %267 = vsyncadd [#allocation6], %s266
          %s268 = sshll.u32 [#allocation7], 4
          %s269 = int_to_ptr.vmem [resolvable:$true] %s268
          %274 = dma.hbm_to_vmem [thread:$0]  %s5, 256, %s269, [#allocation6], 64, 64, 4
        $region24: #{tpu_custom_call.1} parent=11 // pred_fallthru
          _
        // Predicated region
        $region25: #{tpu_custom_call.1} parent=11 // pred_check
          %p275 = pneg %p184
        $region26: #{tpu_custom_call.1} parent=11 // pred_check_branch
          %277 = sbr.rel (%p275) target = $region28
        $region27: #{tpu_custom_call.1} parent=11 // pred_region
          %s279 = ssub.s32 512, 512
          %280 = vsyncadd [#allocation9], %s279
          %s281 = sshll.u32 [#allocation8], 4
          %s282 = int_to_ptr.vmem [resolvable:$true] %s281
          %287 = dma.hbm_to_vmem [thread:$0]  %s6, 512, %s282, [#allocation9], 128, 128, 8
        $region28: #{tpu_custom_call.1} parent=11 // pred_fallthru
          _
        // Predicated region
        $region29: #{tpu_custom_call.1} parent=11 // pred_check
          %p288 = pneg %p205
        $region30: #{tpu_custom_call.1} parent=11 // pred_check_branch
          %290 = sbr.rel (%p288) target = $region32
        $region31: #{tpu_custom_call.1} parent=11 // pred_region
          _
        $region32: #{tpu_custom_call.1} parent=11 // pred_fallthru
          _
      $region12: #{tpu_custom_call.1} parent=5 // pred_fallthru
        _
      %p291 = scmp.lt.s32.totalorder %s22, 2
      // Predicated region
      $region33: #{tpu_custom_call.1} parent=5 // pred_check
        %p292 = pneg %p291
      $region34: #{tpu_custom_call.1} parent=5 // pred_check_branch
        %294 = sbr.rel (%p292) target = $region36
      $region35: #{tpu_custom_call.1} parent=5 // pred_region
        // Predicated region
        $region37: #{tpu_custom_call.1} parent=35 // pred_check
          %p295 = pneg %p42
        $region38: #{tpu_custom_call.1} parent=35 // pred_check_branch
          %297 = sbr.rel (%p295) target = $region40
        $region39: #{tpu_custom_call.1} parent=35 // pred_region
          %s298 = sand.u32 %s32, 1
          %s299 = scalar_lea.sflag [#allocation3], %s298
          %s300 = sand.u32 %s32, 1
          %s301 = smul.addr %s300, 8
          %s302 = scalar_lea.vmem [#allocation2], %s301
          %s303 = smul.u32 2, %s22
          %s305 = ssub.s32 128, 128
          %306 = vsyncadd %s299, %s305
          %s307 = smul.addr %s303, 2
          %s308 = smul.addr %s307, 32
          %s309 = scalar_lea.hbm %s0, %s308
          %s310 = sshll.u32 %s302, 4
          %s311 = int_to_ptr.vmem [resolvable:$true] %s310
          %316 = dma.hbm_to_vmem [thread:$0]  %s309, 128, %s311, %s299, 32, 32, 2
        $region40: #{tpu_custom_call.1} parent=35 // pred_fallthru
          _
        // Predicated region
        $region41: #{tpu_custom_call.1} parent=35 // pred_check
          %p317 = pneg %p68
        $region42: #{tpu_custom_call.1} parent=35 // pred_check_branch
          %319 = sbr.rel (%p317) target = $region44
        $region43: #{tpu_custom_call.1} parent=35 // pred_region
          %s320 = smul.u32 2, %s22
          %p321 = scmp.lt.s32.totalorder %s320, 3
          %s322 = scalar_select %p321, %s320, 3
          %s323 = smul.addr %s322, 2
          %s324 = smul.addr %s323, 8
          %s325 = scalar_lea.vmem %s1, %s324
          %s326 = smul.u32 2, %s22
        $region44: #{tpu_custom_call.1} parent=35 // pred_fallthru
          _
        // Predicated region
        $region45: #{tpu_custom_call.1} parent=35 // pred_check
          %p327 = pneg %p94
        $region46: #{tpu_custom_call.1} parent=35 // pred_check_branch
          %329 = sbr.rel (%p327) target = $region48
        $region47: #{tpu_custom_call.1} parent=35 // pred_region
          %s330 = smul.u32 2, %s22
          %p331 = scmp.lt.s32.totalorder %s330, 3
          %s332 = scalar_select %p331, %s330, 3
          %s333 = smul.addr %s332, 2
          %s334 = smul.addr %s333, 8
          %s335 = scalar_lea.vmem %s2, %s334
          %s336 = smul.u32 2, %s22
        $region48: #{tpu_custom_call.1} parent=35 // pred_fallthru
          _
      $region36: #{tpu_custom_call.1} parent=5 // pred_fallthru
        _
      %p337 = scmp.le.s32.totalorder 1, %s22
      %p338 = scmp.lt.s32.totalorder %s22, 3
      %p339 = pnand %p337, %p338
      %p340 = pneg %p339
      // Predicated region
      $region49: #{tpu_custom_call.1} parent=5 // pred_check
        _
      $region50: #{tpu_custom_call.1} parent=5 // pred_check_branch
        %342 = sbr.rel (%p339) target = $region52
      $region51: #{tpu_custom_call.1} parent=5 // pred_region
        %s343 = ssub.s32 %s22, 1
        %s344 = sand.u32 %s35, 1
        %s345 = scalar_lea.sflag [#allocation3], %s344
        %s346 = sand.u32 %s35, 1
        %s347 = smul.addr %s346, 8
        %s348 = scalar_lea.vmem [#allocation2], %s347
        // Predicated region
        $region53: #{tpu_custom_call.1} parent=51 // pred_check
          %p349 = pneg %p48
        $region54: #{tpu_custom_call.1} parent=51 // pred_check_branch
          %351 = sbr.rel (%p349) target = $region56
        $region55: #{tpu_custom_call.1} parent=51 // pred_region
          %352 = dma.done %s345, 128
        $region56: #{tpu_custom_call.1} parent=51 // pred_fallthru
          _
        // Predicated region
        $region57: #{tpu_custom_call.1} parent=51 // pred_check
          %p353 = pneg %p121
        $region58: #{tpu_custom_call.1} parent=51 // pred_check_branch
          %355 = sbr.rel (%p353) target = $region60
        $region59: #{tpu_custom_call.1} parent=51 // pred_region
          %356 = dma.done [#allocation6], 256
        $region60: #{tpu_custom_call.1} parent=51 // pred_fallthru
          _
        // Predicated region
        $region61: #{tpu_custom_call.1} parent=51 // pred_check
          %p357 = pneg %p163
        $region62: #{tpu_custom_call.1} parent=51 // pred_check_branch
          %359 = sbr.rel (%p357) target = $region64
        $region63: #{tpu_custom_call.1} parent=51 // pred_region
          %360 = dma.done [#allocation6], 256
        $region64: #{tpu_custom_call.1} parent=51 // pred_fallthru
          _
        // Predicated region
        $region65: #{tpu_custom_call.1} parent=51 // pred_check
          %p361 = pneg %p184
        $region66: #{tpu_custom_call.1} parent=51 // pred_check_branch
          %363 = sbr.rel (%p361) target = $region68
        $region67: #{tpu_custom_call.1} parent=51 // pred_region
          %364 = dma.done [#allocation9], 512
        $region68: #{tpu_custom_call.1} parent=51 // pred_fallthru
          _
        %s365 = sand.u32 %s35, 1
        %s366 = scalar_lea.sflag [#allocation3], %s365
        %s367 = sand.u32 %s35, 1
        %s368 = smul.addr %s367, 8
        %s369 = scalar_lea.vmem [#allocation2], %s368
        %p370 = pneg %p48
        %p371 = pneg %p45
        %s372 = smul.u32 2, %s27
        %p373 = scmp.lt.s32.totalorder %s372, 3
        %s374 = scalar_select %p373, %s372, 3
        %s375 = smul.addr %s374, 2
        %s376 = smul.addr %s375, 8
        %s377 = scalar_lea.vmem %s1, %s376
        %p378 = pneg %p74
        %p379 = pneg %p71
        %s380 = smul.u32 2, %s27
        %p381 = scmp.lt.s32.totalorder %s380, 3
        %s382 = scalar_select %p381, %s380, 3
        %s383 = smul.addr %s382, 2
        %s384 = smul.addr %s383, 8
        %s385 = scalar_lea.vmem %s2, %s384
        %p386 = pneg %p100
        %p387 = pneg %p97
        %p388 = pneg %p121
        %p389 = pneg %p118
        %p390 = pneg %p142
        %p391 = pneg %p139
        %p392 = pneg %p163
        %p393 = pneg %p160
        %p394 = pneg %p184
        %p395 = pneg %p181
        %p396 = pneg %p205
        %p397 = pneg %p202
        %p398 = pneg %p231
        %p399 = pneg %p228
        %s400 = sand.u32 %s218, 1
        %s401 = scalar_lea.sflag [#allocation4], %s400
        %s402 = sand.u32 %s218, 1
        %s403 = scalar_lea.vmem [#allocation10], %s402
        %s404 = smul.u32 2, %s27
        %s405 = smul.u32 2, %s27
        %p406 = scmp.lt.s32.totalorder %s405, 3
        %s407 = scalar_select %p406, %s405, 3
        %s408 = smul.addr %s407, 2
        %s409 = smul.addr %s408, 8
        %s410 = scalar_lea.vmem %s1, %s409
        %s411 = smul.u32 2, %s27
        %s412 = smul.u32 2, %s27
        %p413 = scmp.lt.s32.totalorder %s412, 3
        %s414 = scalar_select %p413, %s412, 3
        %s415 = smul.addr %s414, 2
        %s416 = smul.addr %s415, 8
        %s417 = scalar_lea.vmem %s2, %s416
        %s418 = smul.u32 2, %s27
        %v420 = vld [vmem:[%s417] sm:$0xff]
        %v421 = vld [vmem:[%s417 + $0x8] sm:$0xff]
        %v422 = vld [vmem:[%s417 + $0x10] sm:$0xff]
        %v423 = vld [vmem:[%s417 + $0x18] sm:$0xff]
        %v424 = vld [vmem:[#allocation5] sm:$0xff]
        %v425 = vld [vmem:[#allocation5 + $0x8] sm:$0xff]
        %v426 = vld [vmem:[%s4] sm:$0x1]
        %v428 = vlaneseq
        %v429 = vshrl.u32 %v428, 7
        %v430 = vsub.s32 0, %v429
        %v431 = vrot.slane %v426, %v430
        %vm433 = vcmask 130048
        %v435 = vsel %vm433, %v420, 0
        %v438 = vsel %vm433, %v421, 0
        %v441 = vsel %vm433, %v422, 0
        %v444 = vsel %vm433, %v423, 0
        %446 = vmatprep.subr.mxu0 0.0
        %447 = vmatpush1.msra.mxu0 0.0
        %448 = vmatprep.subr.mxu0 0.0
        %449 = vmatpush1.msra.mxu0 0.0
        %450 = vmatprep.subr.mxu0 0.0
        %451 = vmatpush1.msra.mxu0 0.0
        %452 = vmatprep.subr.mxu0 0.0
        %453 = vmatpush1.msra.mxu0 0.0
        %454 = vmatprep.subr.mxu0 0.0
        %455 = vmatpush1.msra.mxu0 0.0
        %456 = vmatprep.subr.mxu0 0.0
        %457 = vmatpush1.msra.mxu0 0.0
        %458 = vmatprep.subr.mxu0 0.0
        %459 = vmatpush1.msra.mxu0 0.0
        %460 = vmatprep.subr.mxu0 0.0
        %461 = vmatpush1.msra.mxu0 0.0
        %462 = vmatprep.subr.mxu0 0.0
        %463 = vmatpush1.msra.mxu0 0.0
        %464 = vmatprep.subr.mxu0 0.0
        %465 = vmatpush1.msra.mxu0 0.0
        %466 = vmatprep.subr.mxu0 0.0
        %467 = vmatpush1.msra.mxu0 0.0
        %468 = vmatprep.subr.mxu0 0.0
        %469 = vmatpush1.msra.mxu0 0.0
        %470 = vmatprep.subr.mxu0 0.0
        %471 = vmatpush1.msra.mxu0 0.0
        %472 = vmatprep.subr.mxu0 0.0
        %473 = vmatpush1.msra.mxu0 0.0
        %474 = vmatprep.subr.mxu0 0.0
        %475 = vmatpush1.msra.mxu0 %v425
        %476 = vmatprep.subr.mxu0 0.0
        %477 = vmatpush1.msra.mxu0 %v424
        %478 = vmatprep.subr.mxu0 0.0
        %479 = vmatpush2.msra.mxu0 0.0
        %480 = vmatprep.subr.mxu0 0.0
        %481 = vmatpush2.msra.mxu0 0.0
        %482 = vmatprep.subr.mxu0 0.0
        %483 = vmatpush2.msra.mxu0 0.0
        %484 = vmatprep.subr.mxu0 0.0
        %485 = vmatpush2.msra.mxu0 0.0
        %486 = vmatprep.subr.mxu0 0.0
        %487 = vmatpush2.msra.mxu0 0.0
        %488 = vmatprep.subr.mxu0 0.0
        %489 = vmatpush2.msra.mxu0 0.0
        %490 = vmatprep.subr.mxu0 0.0
        %491 = vmatpush2.msra.mxu0 0.0
        %492 = vmatprep.subr.mxu0 0.0
        %493 = vmatpush2.msra.mxu0 0.0
        %494 = vmatprep.subr.mxu0 0.0
        %495 = vmatpush2.msra.mxu0 0.0
        %496 = vmatprep.subr.mxu0 0.0
        %497 = vmatpush2.msra.mxu0 0.0
        %498 = vmatprep.subr.mxu0 0.0
        %499 = vmatpush2.msra.mxu0 0.0
        %500 = vmatprep.subr.mxu0 0.0
        %501 = vmatpush2.msra.mxu0 0.0
        %502 = vmatprep.subr.mxu0 0.0
        %503 = vmatpush2.msra.mxu0 0.0
        %504 = vmatprep.subr.mxu0 0.0
        %505 = vmatpush2.msra.mxu0 0.0
        %506 = vmatprep.subr.mxu0 0.0
        %507 = vmatpush2.msra.mxu0 0.0
        %508 = vmatprep.subr.mxu0 0.0
        %509 = vmatpush2.msra.mxu0 0.0
        %510 = vmatprep.mubr.f32.mxu0 0.0
        %511 = vmatmul.mubr.f32.gmra.mxu0 %v435
        %v512 = vpop.f32.mrf.mxu0
        %v513 = vadd.f32 %v431, %v512
        %v514 = vpop.f32.mrf.mxu0
        %515 = vmatprep.mubr.f32.mxu0 0.0
        %516 = vmatmul.mubr.f32.gmra.mxu0 %v438
        %v517 = vpop.f32.mrf.mxu0
        %v518 = vadd.f32 %v431, %v517
        %v519 = vpop.f32.mrf.mxu0
        %520 = vmatprep.mubr.f32.mxu0 0.0
        %521 = vmatmul.mubr.f32.gmra.mxu0 %v441
        %v522 = vpop.f32.mrf.mxu0
        %v523 = vadd.f32 %v431, %v522
        %v524 = vpop.f32.mrf.mxu0
        %525 = vmatprep.mubr.f32.mxu0 0.0
        %526 = vmatmul.mubr.f32.gmra.mxu0 %v444
        %v527 = vpop.f32.mrf.mxu0
        %v528 = vadd.f32 %v431, %v527
        %v529 = vpop.f32.mrf.mxu0
        %530 = vdwg.mxu0
        %v531 = vld [vmem:[%s348] sm:$0x3]
        %v532 = vld [vmem:[%s348 + $0x2] sm:$0x3]
        %v533 = vld [vmem:[%s348 + $0x4] sm:$0x3]
        %v534 = vld [vmem:[%s348 + $0x6] sm:$0x3]
        %v535 = vunpack.c.l.s8.bf16 %v531
        %v536 = vunpack.c.l.s8.bf16 %v532
        %v537 = vunpack.c.l.s8.bf16 %v533
        %v538 = vunpack.c.l.s8.bf16 %v534
        %v539 = vld [vmem:[%s410] sm:$0xff]
        %v540 = vld [vmem:[%s410 + $0x8] sm:$0xff]
        %v541 = vld [vmem:[%s410 + $0x10] sm:$0xff]
        %v542 = vld [vmem:[%s410 + $0x18] sm:$0xff]
        %v543 = vpack.c.bf16 %v518, %v513
        %v544 = vpack.c.bf16 %v528, %v523
        %v547 = vunpack.c.l.b16 %v535
        %v548 = vunpack.c.l.b16 %v536
        %v549 = vpack.c.b16 %v548, %v547
        %v551 = vsel %vm433, %v549, 0
        %553 = vmatprep.subr.bf16.mxu0 0
        %554 = vmatpush1.bf16.msra.mxu0 0
        %555 = vmatprep.subr.bf16.mxu0 0
        %556 = vmatpush1.bf16.msra.mxu0 0
        %557 = vmatprep.subr.bf16.mxu0 0
        %558 = vmatpush1.bf16.msra.mxu0 0
        %559 = vmatprep.subr.bf16.mxu0 0
        %560 = vmatpush1.bf16.msra.mxu0 0
        %561 = vmatprep.subr.bf16.mxu0 0
        %562 = vmatpush1.bf16.msra.mxu0 0
        %563 = vmatprep.subr.bf16.mxu0 0
        %564 = vmatpush1.bf16.msra.mxu0 0
        %565 = vmatprep.subr.bf16.mxu0 0
        %566 = vmatpush1.bf16.msra.mxu0 0
        %567 = vmatprep.subr.bf16.mxu0 0
        %568 = vmatpush1.bf16.msra.mxu0 %v543
        %569 = vmatprep.subr.bf16.mxu0 0
        %570 = vmatpush2.bf16.msra.mxu0 0
        %571 = vmatprep.subr.bf16.mxu0 0
        %572 = vmatpush2.bf16.msra.mxu0 0
        %573 = vmatprep.subr.bf16.mxu0 0
        %574 = vmatpush2.bf16.msra.mxu0 0
        %575 = vmatprep.subr.bf16.mxu0 0
        %576 = vmatpush2.bf16.msra.mxu0 0
        %577 = vmatprep.subr.bf16.mxu0 0
        %578 = vmatpush2.bf16.msra.mxu0 0
        %579 = vmatprep.subr.bf16.mxu0 0
        %580 = vmatpush2.bf16.msra.mxu0 0
        %581 = vmatprep.subr.bf16.mxu0 0
        %582 = vmatpush2.bf16.msra.mxu0 0
        %583 = vmatprep.subr.bf16.mxu0 0
        %584 = vmatpush2.bf16.msra.mxu0 0
        %585 = vmatprep.mubr.bf16.mxu0 0
        %586 = vmatmul.mubr.bf16.gmra.mxu0 %v551
        %v587 = vpop.f32.mrf.mxu0
        %v588 = vadd.f32 0.0, %v587
        %v589 = vpop.f32.mrf.mxu0
        %v590 = vpop.f32.mrf.mxu0
        %v591 = vadd.f32 0.0, %v590
        %v592 = vpop.f32.mrf.mxu0
        %593 = vdwg.mxu0
        %v596 = vunpack.c.l.b16 %v537
        %v597 = vunpack.c.l.b16 %v538
        %v598 = vpack.c.b16 %v597, %v596
        %v600 = vsel %vm433, %v598, 0
        %602 = vmatprep.subr.bf16.mxu0 0
        %603 = vmatpush1.bf16.msra.mxu0 0
        %604 = vmatprep.subr.bf16.mxu0 0
        %605 = vmatpush1.bf16.msra.mxu0 0
        %606 = vmatprep.subr.bf16.mxu0 0
        %607 = vmatpush1.bf16.msra.mxu0 0
        %608 = vmatprep.subr.bf16.mxu0 0
        %609 = vmatpush1.bf16.msra.mxu0 0
        %610 = vmatprep.subr.bf16.mxu0 0
        %611 = vmatpush1.bf16.msra.mxu0 0
        %612 = vmatprep.subr.bf16.mxu0 0
        %613 = vmatpush1.bf16.msra.mxu0 0
        %614 = vmatprep.subr.bf16.mxu0 0
        %615 = vmatpush1.bf16.msra.mxu0 0
        %616 = vmatprep.subr.bf16.mxu0 0
        %617 = vmatpush1.bf16.msra.mxu0 %v544
        %618 = vmatprep.subr.bf16.mxu0 0
        %619 = vmatpush2.bf16.msra.mxu0 0
        %620 = vmatprep.subr.bf16.mxu0 0
        %621 = vmatpush2.bf16.msra.mxu0 0
        %622 = vmatprep.subr.bf16.mxu0 0
        %623 = vmatpush2.bf16.msra.mxu0 0
        %624 = vmatprep.subr.bf16.mxu0 0
        %625 = vmatpush2.bf16.msra.mxu0 0
        %626 = vmatprep.subr.bf16.mxu0 0
        %627 = vmatpush2.bf16.msra.mxu0 0
        %628 = vmatprep.subr.bf16.mxu0 0
        %629 = vmatpush2.bf16.msra.mxu0 0
        %630 = vmatprep.subr.bf16.mxu0 0
        %631 = vmatpush2.bf16.msra.mxu0 0
        %632 = vmatprep.subr.bf16.mxu0 0
        %633 = vmatpush2.bf16.msra.mxu0 0
        %634 = vmatprep.mubr.bf16.mxu0 0
        %635 = vmatmul.mubr.bf16.gmra.mxu0 %v600
        %v636 = vpop.f32.mrf.mxu0
        %v637 = vadd.f32 0.0, %v636
        %v638 = vpop.f32.mrf.mxu0
        %v639 = vpop.f32.mrf.mxu0
        %v640 = vadd.f32 0.0, %v639
        %v641 = vpop.f32.mrf.mxu0
        %642 = vdwg.mxu0
        %644 = vset.pattern.permute.xlu0 0
        %645 = vperm.xlu0 %644, %v539
        %v646 = vpop.permute.xlu0 %645
        %649 = vset.pattern.permute.xlu0 0
        %650 = vperm.xlu0 %649, %v540
        %v651 = vpop.permute.xlu0 %650
        %654 = vset.pattern.permute.xlu0 0
        %655 = vperm.xlu0 %654, %v541
        %v656 = vpop.permute.xlu0 %655
        %659 = vset.pattern.permute.xlu0 0
        %660 = vperm.xlu0 %659, %v542
        %v661 = vpop.permute.xlu0 %660
        %v663 = vmul.f32 %v588, %v646
        %v664 = vmul.f32 %v591, %v651
        %v665 = vmul.f32 %v637, %v656
        %v666 = vmul.f32 %v640, %v661
        %v667 = vpack.c.bf16 %v664, %v663
        %v668 = vpack.c.bf16 %v666, %v665
        %v669 = vld [vmem:[#allocation7] sm:$0xf]
        %v670 = vld [vmem:[#allocation7 + $0x4] sm:$0xf]
        %v671 = vld [vmem:[#allocation7 + $0x8] sm:$0xf]
        %v672 = vld [vmem:[#allocation7 + $0xc] sm:$0xf]
        %v677 = vunpack.c.l.b16 %v669
        %v678 = vunpack.c.l.b16 %v670
        %v679 = vunpack.c.l.b16 %v671
        %v680 = vunpack.c.l.b16 %v672
        %v681 = vpack.c.b16 %v678, %v677
        %v682 = vpack.c.b16 %v680, %v679
        %vm685 = vcmask 261120
        %v687 = vsel %vm685, %v667, 0
        %v690 = vsel %vm685, %v668, 0
        %692 = vmatprep.subr.bf16.mxu0 0
        %693 = vmatpush1.bf16.msra.mxu0 0
        %694 = vmatprep.subr.bf16.mxu0 0
        %695 = vmatpush1.bf16.msra.mxu0 0
        %696 = vmatprep.subr.bf16.mxu0 0
        %697 = vmatpush1.bf16.msra.mxu0 0
        %698 = vmatprep.subr.bf16.mxu0 0
        %699 = vmatpush1.bf16.msra.mxu0 0
        %700 = vmatprep.subr.bf16.mxu0 0
        %701 = vmatpush1.bf16.msra.mxu0 0
        %702 = vmatprep.subr.bf16.mxu0 0
        %703 = vmatpush1.bf16.msra.mxu0 0
        %704 = vmatprep.subr.bf16.mxu0 0
        %705 = vmatpush1.bf16.msra.mxu0 %v682
        %706 = vmatprep.subr.bf16.mxu0 0
        %707 = vmatpush1.bf16.msra.mxu0 %v681
        %708 = vmatprep.subr.bf16.mxu0 0
        %709 = vmatpush2.bf16.msra.mxu0 0
        %710 = vmatprep.subr.bf16.mxu0 0
        %711 = vmatpush2.bf16.msra.mxu0 0
        %712 = vmatprep.subr.bf16.mxu0 0
        %713 = vmatpush2.bf16.msra.mxu0 0
        %714 = vmatprep.subr.bf16.mxu0 0
        %715 = vmatpush2.bf16.msra.mxu0 0
        %716 = vmatprep.subr.bf16.mxu0 0
        %717 = vmatpush2.bf16.msra.mxu0 0
        %718 = vmatprep.subr.bf16.mxu0 0
        %719 = vmatpush2.bf16.msra.mxu0 0
        %720 = vmatprep.subr.bf16.mxu0 0
        %721 = vmatpush2.bf16.msra.mxu0 0
        %722 = vmatprep.subr.bf16.mxu0 0
        %723 = vmatpush2.bf16.msra.mxu0 0
        %724 = vmatprep.mubr.bf16.mxu0 0
        %725 = vmatmul.mubr.bf16.gmra.mxu0 %v687
        %v726 = vpop.f32.mrf.mxu0
        %v727 = vadd.f32 0.0, %v726
        %v728 = vpop.f32.mrf.mxu0
        %v729 = vpop.f32.mrf.mxu0
        %v730 = vadd.f32 0.0, %v729
        %v731 = vpop.f32.mrf.mxu0
        %732 = vmatprep.mubr.bf16.mxu0 0
        %733 = vmatmul.mubr.bf16.gmra.mxu0 %v690
        %v734 = vpop.f32.mrf.mxu0
        %v735 = vadd.f32 0.0, %v734
        %v736 = vpop.f32.mrf.mxu0
        %v737 = vpop.f32.mrf.mxu0
        %v738 = vadd.f32 0.0, %v737
        %v739 = vpop.f32.mrf.mxu0
        %740 = vdwg.mxu0
        %v741 = vmax.f32 %v727, 0.0
        %v742 = vmax.f32 %v730, 0.0
        %v743 = vmax.f32 %v735, 0.0
        %v744 = vmax.f32 %v738, 0.0
        %v745 = vsel %vm685, %v741, 0.0
        %v746 = vsel %vm685, %v742, 0.0
        %v747 = vadd.f32 %v745, %v746
        %v748 = vrot.slane %v747, 4
        %v749 = vadd.f32 %v747, %v748
        %v750 = vrot.slane %v749, 2
        %v751 = vadd.f32 %v749, %v750
        %v752 = vrot.slane %v751, 1
        %v753 = vadd.f32 %v751, %v752
        %v754 = vsel %vm685, %v743, 0.0
        %v755 = vsel %vm685, %v744, 0.0
        %v756 = vadd.f32 %v754, %v755
        %v757 = vrot.slane %v756, 4
        %v758 = vadd.f32 %v756, %v757
        %v759 = vrot.slane %v758, 2
        %v760 = vadd.f32 %v758, %v759
        %v761 = vrot.slane %v760, 1
        %v762 = vadd.f32 %v760, %v761
        %v763 = vmul.f32 %v753, 0.0625
        %v764 = vmul.f32 %v762, 0.0625
        %v765 = vld [vmem:[#allocation8] sm:$0xff]
        %v766 = vld [vmem:[#allocation8 + $0x8] sm:$0xff]
        %v767 = vld [vmem:[#allocation8 + $0x10] sm:$0xff]
        %v768 = vld [vmem:[#allocation8 + $0x18] sm:$0xff]
        %vm771 = vcmask 1041409
        %v772 = vsel %vm771, %v764, %v763
        %v774 = vsel %vm685, %v765, 0
        %v777 = vsel %vm685, %v766, 0
        %v780 = vsel %vm685, %v767, 0
        %v783 = vsel %vm685, %v768, 0
        %v785 = vsel %vm685, %v772, 0
        %787 = vmatprep.subr.mxu0 0.0
        %788 = vmatpush1.xpose.msra.mxu0 0.0
        %789 = vmatprep.subr.mxu0 0.0
        %790 = vmatpush1.xpose.msra.mxu0 0.0
        %791 = vmatprep.subr.mxu0 0.0
        %792 = vmatpush1.xpose.msra.mxu0 0.0
        %793 = vmatprep.subr.mxu0 0.0
        %794 = vmatpush1.xpose.msra.mxu0 0.0
        %795 = vmatprep.subr.mxu0 0.0
        %796 = vmatpush1.xpose.msra.mxu0 0.0
        %797 = vmatprep.subr.mxu0 0.0
        %798 = vmatpush1.xpose.msra.mxu0 0.0
        %799 = vmatprep.subr.mxu0 0.0
        %800 = vmatpush1.xpose.msra.mxu0 0.0
        %801 = vmatprep.subr.mxu0 0.0
        %802 = vmatpush1.xpose.msra.mxu0 0.0
        %803 = vmatprep.subr.mxu0 0.0
        %804 = vmatpush1.xpose.msra.mxu0 0.0
        %805 = vmatprep.subr.mxu0 0.0
        %806 = vmatpush1.xpose.msra.mxu0 0.0
        %807 = vmatprep.subr.mxu0 0.0
        %808 = vmatpush1.xpose.msra.mxu0 0.0
        %809 = vmatprep.subr.mxu0 0.0
        %810 = vmatpush1.xpose.msra.mxu0 0.0
        %811 = vmatprep.subr.mxu0 0.0
        %812 = vmatpush1.xpose.msra.mxu0 0.0
        %813 = vmatprep.subr.mxu0 0.0
        %814 = vmatpush1.xpose.msra.mxu0 0.0
        %815 = vmatprep.subr.mxu0 0.0
        %816 = vmatpush1.xpose.msra.mxu0 0.0
        %817 = vmatprep.subr.mxu0 0.0
        %818 = vmatpush1.xpose.msra.mxu0 %v785
        %819 = vmatprep.subr.mxu0 0.0
        %820 = vmatpush2.xpose.msra.mxu0 0.0
        %821 = vmatprep.subr.mxu0 0.0
        %822 = vmatpush2.xpose.msra.mxu0 0.0
        %823 = vmatprep.subr.mxu0 0.0
        %824 = vmatpush2.xpose.msra.mxu0 0.0
        %825 = vmatprep.subr.mxu0 0.0
        %826 = vmatpush2.xpose.msra.mxu0 0.0
        %827 = vmatprep.subr.mxu0 0.0
        %828 = vmatpush2.xpose.msra.mxu0 0.0
        %829 = vmatprep.subr.mxu0 0.0
        %830 = vmatpush2.xpose.msra.mxu0 0.0
        %831 = vmatprep.subr.mxu0 0.0
        %832 = vmatpush2.xpose.msra.mxu0 0.0
        %833 = vmatprep.subr.mxu0 0.0
        %834 = vmatpush2.xpose.msra.mxu0 0.0
        %835 = vmatprep.subr.mxu0 0.0
        %836 = vmatpush2.xpose.msra.mxu0 0.0
        %837 = vmatprep.subr.mxu0 0.0
        %838 = vmatpush2.xpose.msra.mxu0 0.0
        %839 = vmatprep.subr.mxu0 0.0
        %840 = vmatpush2.xpose.msra.mxu0 0.0
        %841 = vmatprep.subr.mxu0 0.0
        %842 = vmatpush2.xpose.msra.mxu0 0.0
        %843 = vmatprep.subr.mxu0 0.0
        %844 = vmatpush2.xpose.msra.mxu0 0.0
        %845 = vmatprep.subr.mxu0 0.0
        %846 = vmatpush2.xpose.msra.mxu0 0.0
        %847 = vmatprep.subr.mxu0 0.0
        %848 = vmatpush2.xpose.msra.mxu0 0.0
        %849 = vmatprep.subr.mxu0 0.0
        %850 = vmatpush2.xpose.msra.mxu0 0.0
        %851 = vmatprep.mubr.f32.mxu0 0.0
        %852 = vmatmul.mubr.f32.gmra.mxu0 %v774
        %v853 = vpop.f32.mrf.mxu0
        %v854 = vadd.f32 0.0, %v853
        %v855 = vpop.f32.mrf.mxu0
        %856 = vmatprep.mubr.f32.mxu0 0.0
        %857 = vmatmul.mubr.f32.gmra.mxu0 %v777
        %v858 = vpop.f32.mrf.mxu0
        %v859 = vadd.f32 0.0, %v858
        %v860 = vpop.f32.mrf.mxu0
        %861 = vmatprep.mubr.f32.mxu0 0.0
        %862 = vmatmul.mubr.f32.gmra.mxu0 %v780
        %v863 = vpop.f32.mrf.mxu0
        %v864 = vadd.f32 0.0, %v863
        %v865 = vpop.f32.mrf.mxu0
        %866 = vmatprep.mubr.f32.mxu0 0.0
        %867 = vmatmul.mubr.f32.gmra.mxu0 %v783
        %v868 = vpop.f32.mrf.mxu0
        %v869 = vadd.f32 0.0, %v868
        %v870 = vpop.f32.mrf.mxu0
        %871 = vdwg.mxu0
        %v872 = vmax.f32 %v854, 0.0
        %v873 = vmax.f32 %v859, 0.0
        %v874 = vmax.f32 %v864, 0.0
        %v875 = vmax.f32 %v869, 0.0
        %v876 = vld [vmem:[%s7] sm:$0x1]
        %v878 = vsel %vm685, %v876, 0
        %880 = vmatprep.subr.mxu0 0.0
        %881 = vmatpush1.msra.mxu0 0.0
        %882 = vmatprep.subr.mxu0 0.0
        %883 = vmatpush1.msra.mxu0 0.0
        %884 = vmatprep.subr.mxu0 0.0
        %885 = vmatpush1.msra.mxu0 0.0
        %886 = vmatprep.subr.mxu0 0.0
        %887 = vmatpush1.msra.mxu0 0.0
        %888 = vmatprep.subr.mxu0 0.0
        %889 = vmatpush1.msra.mxu0 0.0
        %890 = vmatprep.subr.mxu0 0.0
        %891 = vmatpush1.msra.mxu0 0.0
        %892 = vmatprep.subr.mxu0 0.0
        %893 = vmatpush1.msra.mxu0 0.0
        %894 = vmatprep.subr.mxu0 0.0
        %895 = vmatpush1.msra.mxu0 0.0
        %896 = vmatprep.subr.mxu0 0.0
        %897 = vmatpush1.msra.mxu0 0.0
        %898 = vmatprep.subr.mxu0 0.0
        %899 = vmatpush1.msra.mxu0 0.0
        %900 = vmatprep.subr.mxu0 0.0
        %901 = vmatpush1.msra.mxu0 0.0
        %902 = vmatprep.subr.mxu0 0.0
        %903 = vmatpush1.msra.mxu0 0.0
        %904 = vmatprep.subr.mxu0 0.0
        %905 = vmatpush1.msra.mxu0 %v875
        %906 = vmatprep.subr.mxu0 0.0
        %907 = vmatpush1.msra.mxu0 %v874
        %908 = vmatprep.subr.mxu0 0.0
        %909 = vmatpush1.msra.mxu0 %v873
        %910 = vmatprep.subr.mxu0 0.0
        %911 = vmatpush1.msra.mxu0 %v872
        %912 = vmatprep.subr.mxu0 0.0
        %913 = vmatpush2.msra.mxu0 0.0
        %914 = vmatprep.subr.mxu0 0.0
        %915 = vmatpush2.msra.mxu0 0.0
        %916 = vmatprep.subr.mxu0 0.0
        %917 = vmatpush2.msra.mxu0 0.0
        %918 = vmatprep.subr.mxu0 0.0
        %919 = vmatpush2.msra.mxu0 0.0
        %920 = vmatprep.subr.mxu0 0.0
        %921 = vmatpush2.msra.mxu0 0.0
        %922 = vmatprep.subr.mxu0 0.0
        %923 = vmatpush2.msra.mxu0 0.0
        %924 = vmatprep.subr.mxu0 0.0
        %925 = vmatpush2.msra.mxu0 0.0
        %926 = vmatprep.subr.mxu0 0.0
        %927 = vmatpush2.msra.mxu0 0.0
        %928 = vmatprep.subr.mxu0 0.0
        %929 = vmatpush2.msra.mxu0 0.0
        %930 = vmatprep.subr.mxu0 0.0
        %931 = vmatpush2.msra.mxu0 0.0
        %932 = vmatprep.subr.mxu0 0.0
        %933 = vmatpush2.msra.mxu0 0.0
        %934 = vmatprep.subr.mxu0 0.0
        %935 = vmatpush2.msra.mxu0 0.0
        %936 = vmatprep.subr.mxu0 0.0
        %937 = vmatpush2.msra.mxu0 0.0
        %938 = vmatprep.subr.mxu0 0.0
        %939 = vmatpush2.msra.mxu0 0.0
        %940 = vmatprep.subr.mxu0 0.0
        %941 = vmatpush2.msra.mxu0 0.0
        %942 = vmatprep.subr.mxu0 0.0
        %943 = vmatpush2.msra.mxu0 0.0
        %944 = vmatprep.mubr.f32.mxu0 0.0
        %945 = vmatmul.mubr.f32.gmra.mxu0 %v878
        %v946 = vpop.f32.mrf.mxu0
        %v947 = vadd.f32 0.0, %v946
        %v948 = vpop.f32.mrf.mxu0
        %949 = vdwg.mxu0
        %vm950 = vcmask 8192
        %951 = vst.msk [vmem:[%s403] sm:$0x1] %vm950, %v947
        %s952 = sand.u32 %s218, 1
        %s953 = scalar_lea.sflag [#allocation4], %s952
        %s954 = sand.u32 %s218, 1
        %s955 = scalar_lea.vmem [#allocation10], %s954
        // Predicated region
        $region69: #{tpu_custom_call.1} parent=51 // pred_check
          %p956 = pneg %p228
        $region70: #{tpu_custom_call.1} parent=51 // pred_check_branch
          %958 = sbr.rel (%p956) target = $region72
        $region71: #{tpu_custom_call.1} parent=51 // pred_region
          %s960 = ssub.s32 16, 16
          %961 = vsyncadd %s953, %s960
          %s962 = smul.addr %s27, 16
          %s963 = scalar_lea.hbm %s8, %s962
          %s965 = sshll.u32 %s955, 4
          %s966 = int_to_ptr.vmem [resolvable:$true] %s965
          %968 = dma.vmem_to_hbm [thread:$0]  %s966, 16, %s963, %s953
        $region72: #{tpu_custom_call.1} parent=51 // pred_fallthru
          _
      $region52: #{tpu_custom_call.1} parent=5 // pred_fallthru
        _
      %p969 = scmp.le.s32.totalorder 2, %s22
      // Predicated region
      $region73: #{tpu_custom_call.1} parent=5 // pred_check
        %p970 = pneg %p969
      $region74: #{tpu_custom_call.1} parent=5 // pred_check_branch
        %972 = sbr.rel (%p970) target = $region76
      $region75: #{tpu_custom_call.1} parent=5 // pred_region
        %s973 = ssub.s32 %s22, 2
        // Predicated region
        $region77: #{tpu_custom_call.1} parent=75 // pred_check
          %p974 = pneg %p234
        $region78: #{tpu_custom_call.1} parent=75 // pred_check_branch
          %976 = sbr.rel (%p974) target = $region80
        $region79: #{tpu_custom_call.1} parent=75 // pred_region
          %s977 = sand.u32 %s219, 1
          %s978 = scalar_lea.sflag [#allocation4], %s977
          %s979 = sand.u32 %s219, 1
          %s980 = scalar_lea.vmem [#allocation10], %s979
          %981 = dma.done %s978, 16
        $region80: #{tpu_custom_call.1} parent=75 // pred_fallthru
          _
      $region76: #{tpu_custom_call.1} parent=5 // pred_fallthru
        _
    $region6: #{tpu_custom_call.1} parent=1 // loop_footer
      %s26 = sadd.s32 1, %s22
    $region7: #{tpu_custom_call.1} parent=1 // loop_footer_branch
      %21 = sbr.rel target = $region3
    $region8: #{tpu_custom_call.1} parent=1 // loop_exit
      _
    %982 = vsyncpa [#allocation3], 1
    %s983 = scalar_lea.sflag [#allocation3], 1
    %984 = vsyncpa %s983, 1
    %985 = vsyncpa [#allocation6], 1
    %986 = vsyncpa [#allocation9], 1
    %987 = vsyncpa [#allocation4], 1
    %s988 = scalar_lea.sflag [#allocation4], 1
    %989 = vsyncpa %s988, 1

</llo_original>
